<compile_context>
chip_gen: v5e
topology: v5e:2x2
jax: 0.10.0
libtpu: 0.0.40
codegen_flags: <defaults>
</compile_context>

<pallas_src>
import functools

import jax
import jax.numpy as jnp
from jax.experimental import pallas as pl
from jax.experimental.pallas import tpu as pltpu


_UNROLL_MAX_C = 16  # channel count up to which we use the unrolled SMEM-scalar FMA path


def _output_block_kernel_narrow(w_ref, x_ref, o_ref, *, use_activate):
    # w_ref: (C,) f32 weights in SMEM (scalar-prefetched)
    # x_ref: (C, TS) input tile for one batch element (VMEM)
    # o_ref: (1, TS) output tile (VMEM)
    C = x_ref.shape[0]
    # Tree-reduced scalar*vector FMA over channels; accumulate in f32.
    terms = [x_ref[c, :].astype(jnp.float32) * w_ref[c] for c in range(C)]
    while len(terms) > 1:
        nxt = []
        for i in range(0, len(terms) - 1, 2):
            nxt.append(terms[i] + terms[i + 1])
        if len(terms) % 2:
            nxt.append(terms[-1])
        terms = nxt
    acc = terms[0]
    if use_activate:
        acc = jax.nn.sigmoid(acc)  # EUP transcendental, free slot next to VPU/DMA
    o_ref[0, :] = acc.astype(o_ref.dtype)


def _output_block_kernel_wide(w_ref, x_ref, o_ref, *, use_activate):
    # w_ref: (C, 1) f32 weight column (VMEM, replicated across grid)
    # x_ref: (C, TS) input tile (VMEM)
    # o_ref: (1, TS) output tile (VMEM)
    acc = jnp.sum(x_ref[...].astype(jnp.float32) * w_ref[...], axis=0, keepdims=True)
    if use_activate:
        acc = jax.nn.sigmoid(acc)
    o_ref[...] = acc.astype(o_ref.dtype)


def _pick_tile(DHW, C, bytes_per_elt, max_tile_s):
    # Tile size: as large as possible (amortize per-step overhead, lane-dense stores)
    # while keeping the double-buffered input block well under the scoped-VMEM default.
    vmem_cap_ts = max(128, (4 * 1024 * 1024) // (2 * C * bytes_per_elt))
    vmem_cap_ts = (vmem_cap_ts // 128) * 128
    ts_cap = min(max_tile_s, vmem_cap_ts)
    if DHW <= ts_cap:
        return DHW  # single spatial tile; block == full dim (always legal)
    return ts_cap   # multiple of 128; boundary tile handled by Pallas masking


def output_block_forward(x_ncdhw, weight, *, use_activate=False, max_tile_s=32768):
    """Forward pass of OutputBlock.

    x_ncdhw: (N, C, D, H, W)
    weight : (C, 1, 1, 1, 1)  (nn.ConvTranspose3d(C, 1, 1, bias=False) weight)
    returns: (N, 1, D, H, W)
    """
    N, C, D, H, W = x_ncdhw.shape
    DHW = D * H * W

    # Free, contiguous reshapes -- no extra HBM round trip.
    x3d = x_ncdhw.reshape(N, C, DHW)
    ts = _pick_tile(DHW, C, x_ncdhw.dtype.itemsize, max_tile_s)
    num_tiles = pl.cdiv(DHW, ts)

    cparams = pltpu.CompilerParams(dimension_semantics=("parallel", "parallel"))

    if C <= _UNROLL_MAX_C:
        w_flat = weight.reshape(C).astype(jnp.float32)
        kernel = functools.partial(_output_block_kernel_narrow,
                                   use_activate=use_activate)
        out3d = pl.pallas_call(
            kernel,
            out_shape=jax.ShapeDtypeStruct((N, 1, DHW), x_ncdhw.dtype),
            grid_spec=pltpu.PrefetchScalarGridSpec(
                num_scalar_prefetch=1,          # weights -> SMEM
                grid=(N, num_tiles),
                in_specs=[
                    # (N, C, DHW): one batch element, all channels, one spatial tile.
                    pl.BlockSpec((None, C, ts), lambda n, i, w: (n, 0, i)),
                ],
                out_specs=pl.BlockSpec((None, 1, ts), lambda n, i, w: (n, 0, i)),
            ),
            compiler_params=cparams,
        )(w_flat, x3d)
    else:
        w_col = weight.reshape(C, 1).astype(jnp.float32)
        kernel = functools.partial(_output_block_kernel_wide,
                                   use_activate=use_activate)
        out3d = pl.pallas_call(
            kernel,
            out_shape=jax.ShapeDtypeStruct((N, 1, DHW), x_ncdhw.dtype),
            grid_spec=pltpu.PrefetchScalarGridSpec(
                num_scalar_prefetch=0,
                grid=(N, num_tiles),
                in_specs=[
                    pl.BlockSpec((C, 1), lambda n, i: (0, 0)),        # weight column
                    pl.BlockSpec((None, C, ts), lambda n, i: (n, 0, i)),
                ],
                out_specs=pl.BlockSpec((None, 1, ts), lambda n, i: (n, 0, i)),
            ),
            compiler_params=cparams,
        )(w_col, x3d)

    # Free reshape back to NCDHW with a single output channel.
    return out3d.reshape(N, 1, D, H, W)


if __name__ == "__main__":
    key = jax.random.PRNGKey(0)
    k_x, k_w, k_x2, k_w2 = jax.random.split(key, 4)

    # --- Narrow-channel path (unrolled SMEM-scalar FMA) ---
    N, C, D, H, W = 2, 4, 4, 8, 16
    x = jax.random.normal(k_x, (N, C, D, H, W), dtype=jnp.float32)
    weight = jax.random.normal(k_w, (C, 1, 1, 1, 1), dtype=jnp.float32) * 0.1

    out = jax.block_until_ready(output_block_forward(x, weight, use_activate=False))
    ref = jnp.einsum("ncdhw,c->ndhw", x, weight.reshape(C))[:, None]
    assert out.shape == (N, 1, D, H, W), out.shape
    assert jnp.allclose(out, ref, atol=1e-5, rtol=1e-5), "mismatch vs reference"

    out_act = jax.block_until_ready(output_block_forward(x, weight, use_activate=True))
    ref_act = jax.nn.sigmoid(ref)
    assert jnp.allclose(out_act, ref_act, atol=1e-5, rtol=1e-5), "mismatch (sigmoid)"

    # --- Wide-channel path (VMEM weight column, VPU multiply + sublane reduce) ---
    C2 = 24
    x2 = jax.random.normal(k_x2, (N, C2, D, H, W), dtype=jnp.float32)
    w2 = jax.random.normal(k_w2, (C2, 1, 1, 1, 1), dtype=jnp.float32) * 0.1
    out2 = jax.block_until_ready(output_block_forward(x2, w2, use_activate=True))
    ref2 = jax.nn.sigmoid(jnp.einsum("ncdhw,c->ndhw", x2, w2.reshape(C2)))[:, None]
    assert out2.shape == (N, 1, D, H, W), out2.shape
    assert jnp.allclose(out2, ref2, atol=1e-5, rtol=1e-5), "mismatch (wide path)"

    print("KERNEL_OK")
</pallas_src>

<mosaic_0001>
module attributes {stable_mosaic.version = 11 : i64} {
  func.func @_output_block_kernel_narrow(%arg0: i32, %arg1: i32, %arg2: memref<4xf32, #tpu.memory_space<smem>>, %arg3: memref<1x4x512xf32, #tpu.memory_space<vmem>>, %arg4: memref<1x1x512xf32, #tpu.memory_space<vmem>>) attributes {dimension_semantics = [#tpu.dimension_semantics<parallel>, #tpu.dimension_semantics<parallel>], iteration_bounds = array<i64: 2, 1>, scalar_prefetch = 1 : i64, scratch_operands = 0 : i64, tpu.core_type = #tpu.core_type<tc>, window_params = [{transform_indices = @transform_0, window_bounds = array<i64: 1, 4, 512>}, {transform_indices = @transform_1, window_bounds = array<i64: 1, 1, 512>}]} {
    %c0 = arith.constant 0 : index
    %c0_0 = arith.constant 0 : index
    %c0_1 = arith.constant 0 : index
    %0 = vector.load %arg3[%c0, %c0_0, %c0_1] : memref<1x4x512xf32, #tpu.memory_space<vmem>>, vector<1x1x512xf32>
    %1 = vector.shape_cast %0 : vector<1x1x512xf32> to vector<512xf32>
    %c0_2 = arith.constant 0 : index
    %2 = memref.load %arg2[%c0_2] : memref<4xf32, #tpu.memory_space<smem>>
    %3 = vector.broadcast %2 : f32 to vector<512xf32>
    %4 = arith.mulf %1, %3 : vector<512xf32>
    %c0_3 = arith.constant 0 : index
    %c1 = arith.constant 1 : index
    %c0_4 = arith.constant 0 : index
    %5 = vector.load %arg3[%c0_3, %c1, %c0_4] : memref<1x4x512xf32, #tpu.memory_space<vmem>>, vector<1x1x512xf32>
    %6 = vector.shape_cast %5 : vector<1x1x512xf32> to vector<512xf32>
    %c1_5 = arith.constant 1 : index
    %7 = memref.load %arg2[%c1_5] : memref<4xf32, #tpu.memory_space<smem>>
    %8 = vector.broadcast %7 : f32 to vector<512xf32>
    %9 = arith.mulf %6, %8 : vector<512xf32>
    %c0_6 = arith.constant 0 : index
    %c2 = arith.constant 2 : index
    %c0_7 = arith.constant 0 : index
    %10 = vector.load %arg3[%c0_6, %c2, %c0_7] : memref<1x4x512xf32, #tpu.memory_space<vmem>>, vector<1x1x512xf32>
    %11 = vector.shape_cast %10 : vector<1x1x512xf32> to vector<512xf32>
    %c2_8 = arith.constant 2 : index
    %12 = memref.load %arg2[%c2_8] : memref<4xf32, #tpu.memory_space<smem>>
    %13 = vector.broadcast %12 : f32 to vector<512xf32>
    %14 = arith.mulf %11, %13 : vector<512xf32>
    %c0_9 = arith.constant 0 : index
    %c3 = arith.constant 3 : index
    %c0_10 = arith.constant 0 : index
    %15 = vector.load %arg3[%c0_9, %c3, %c0_10] : memref<1x4x512xf32, #tpu.memory_space<vmem>>, vector<1x1x512xf32>
    %16 = vector.shape_cast %15 : vector<1x1x512xf32> to vector<512xf32>
    %c3_11 = arith.constant 3 : index
    %17 = memref.load %arg2[%c3_11] : memref<4xf32, #tpu.memory_space<smem>>
    %18 = vector.broadcast %17 : f32 to vector<512xf32>
    %19 = arith.mulf %16, %18 : vector<512xf32>
    %20 = arith.addf %4, %9 : vector<512xf32>
    %21 = arith.addf %14, %19 : vector<512xf32>
    %22 = arith.addf %20, %21 : vector<512xf32>
    %c0_12 = arith.constant 0 : index
    %c0_13 = arith.constant 0 : index
    %c0_14 = arith.constant 0 : index
    %23 = vector.load %arg4[%c0_12, %c0_13, %c0_14] : memref<1x1x512xf32, #tpu.memory_space<vmem>>, vector<1x1x512xf32>
    %24 = vector.shape_cast %23 : vector<1x1x512xf32> to vector<512xf32>
    %25 = vector.shape_cast %22 : vector<512xf32> to vector<1x1x512xf32>
    tpu.vector_store %arg4[%c0_12, %c0_13, %c0_14], %25 {strides = array<i32>} : memref<1x1x512xf32, #tpu.memory_space<vmem>>, vector<1x1x512xf32>,
    return
  }
  func.func @transform_0(%arg0: i32, %arg1: i32, %arg2: memref<4xf32, #tpu.memory_space<smem>>) -> (i32, i32, i32) {
    %c0_i32 = arith.constant 0 : i32
    %c0_i32_0 = arith.constant 0 : i32
    return %arg0, %c0_i32, %arg1 : i32, i32, i32
  }
  func.func @transform_1(%arg0: i32, %arg1: i32, %arg2: memref<4xf32, #tpu.memory_space<smem>>) -> (i32, i32, i32) {
    %c0_i32 = arith.constant 0 : i32
    %c0_i32_0 = arith.constant 0 : i32
    return %arg0, %c0_i32, %arg1 : i32, i32, i32
  }
}

</mosaic_0001>

<llo_original>
// kernel: tpu_custom_call.1
$region0: #{tpu_custom_call.1}
  #allocation0 [shape = 'u32[]', space=smem, size = 0x4, offset = 0x4, fixed_abs, tag = 'smem constant byte address 0x4 - core index']
  #allocation1 [shape = 'u32[72,128]{1,0:T(1,128)}', space=vmem, size = 0x9000, scoped, tag = 'internal scratch']
  #allocation2 [shape = 's32[1]{0}', space=sflag, size = 0x4, scoped, tag = 'scoped memory for tpu_custom_call.1']
  #allocation3 [shape = 'u8[512]{0}', space=smem, size = 0x200, scoped, tag = 'prefetched SMEM operand 0']
  %s0 = inlined_call_operand.hbm [shape: f32[4], index: 0, kind: input, shape index: {}]
  %s1 = inlined_call_operand.hbm [shape: f32[2,4,512], index: 1, kind: input, shape index: {}]
  %s2 = inlined_call_operand.hbm [shape: f32[2,1,512], index: 2, kind: output, shape index: {}]
  %s3 = sld [smem:[#allocation0]]
  $region41: #{tpu_custom_call.1} parent=0
    _
  %s5 = ssub.s32 1, %s3
  %s6 = scalar_select 0, %s5, %s3
  %s8 = sshll.u32 %s0, 4
  %s9 = int_to_ptr.hbm [resolvable:$true] %s8
  %11 = dma.hbm_to_smem %s9, 16, [#allocation3], [#allocation2]
  %13 = dma.done [#allocation2], 16
  %14 = sfence
  $region1: #{tpu_custom_call.1} parent=0
    #allocation4 [shape = 'u8[16384]{0}', space=vmem, size = 0x4000, scoped, tag = 'input window, operand 1']
    #allocation5 [shape = 's32[2]{0}', space=sflag, size = 0x8, scoped, tag = 'scoped memory for tpu_custom_call.1']
    #allocation6 [shape = 's32[2]{0}', space=sflag, size = 0x8, scoped, tag = 'scoped memory for tpu_custom_call.1']
    #allocation7 [shape = 'u8[4096]{0}', space=vmem, size = 0x1000, scoped, tag = 'output window, operand 0']
    %15 = vsyncpa [#allocation5], 0
    %s16 = scalar_lea.sflag [#allocation5], 1
    %17 = vsyncpa %s16, 0
    %18 = vsyncpa [#allocation6], 0
    %s19 = scalar_lea.sflag [#allocation6], 1
    %20 = vsyncpa %s19, 0
    loop: start=0, step=1, limit=4
    $region2: #{tpu_custom_call.1} parent=1 // loop_pre_header
      _
    $region3: #{tpu_custom_call.1} parent=1 // loop_header
      %s22 = sphi 0, %s26
      %p23 = scmp.ge.s32.totalorder %s22, 4
      %s29 = sphi 0, %s41
      %s30 = sphi 0, %s37
      %s31 = sphi 0, %s29
      %s32 = sphi 0, %s30
      %s33 = sphi 0, %s31
      %s34 = sphi 0, %s32
      %s46 = sphi 0, %s48
      %s49 = sphi 0, %s46
      %s50 = sphi 0, %s49
      %s66 = sphi 0, %s50
      %s74 = sphi 0, %s76
      %s77 = sphi 0, %s74
      %s78 = sphi 0, %s77
      %s94 = sphi 0, %s78
    $region4: #{tpu_custom_call.1} parent=1 // loop_header_branch
      %25 = sbr.rel (%p23) target = $region8
    $region5: #{tpu_custom_call.1} parent=1 // loop_body
      %s27 = ssub.s32 %s22, 1
      %s28 = ssub.s32 %s22, 2
      %s35 = sadd.s32 1, %s30
      %p36 = scmp.ge.s32.totalorder %s35, 1
      %s37 = scalar_select %p36, 0, %s35
      %s38 = sadd.s32 1, %s29
      %s39 = scalar_select %p36, %s38, %s29
      %p40 = scmp.ge.s32.totalorder %s39, 2
      %s41 = scalar_select %p40, 0, %s39
      %s42 = ssub.s32 %s29, %s41
      %s43 = ssub.s32 %s30, %s37
      %s44 = sor.u32 %s42, %s43
      %p45 = scmp.eq.s32.totalorder %s44, 0
      %s47 = sadd.s32 %s46, 1
      %s48 = scalar_select %p45, %s46, %s47
      %p51 = pneg %p45
      %p52 = scmp.eq.s32.totalorder %s22, 1
      %p53 = por %p51, %p52
      %p54 = scmp.ne.s32.totalorder %s46, %s49
      %p55 = scmp.eq.s32.totalorder %s22, 0
      %p56 = por %p54, %p55
      %p57 = scmp.ne.s32.totalorder %s46, %s49
      %p58 = scmp.eq.s32.totalorder %s27, 1
      %p59 = por %p57, %p58
      %p60 = scmp.ne.s32.totalorder %s49, %s50
      %p61 = scmp.eq.s32.totalorder %s27, 0
      %p62 = por %p60, %p61
      %p63 = scmp.ne.s32.totalorder %s49, %s50
      %p64 = scmp.eq.s32.totalorder %s28, 1
      %p65 = por %p63, %p64
      %p67 = scmp.ne.s32.totalorder %s50, %s66
      %p68 = scmp.eq.s32.totalorder %s28, 0
      %p69 = por %p67, %p68
      %s70 = ssub.s32 %s29, %s41
      %s71 = ssub.s32 %s30, %s37
      %s72 = sor.u32 %s70, %s71
      %p73 = scmp.eq.s32.totalorder %s72, 0
      %s75 = sadd.s32 %s74, 1
      %s76 = scalar_select %p73, %s74, %s75
      %p79 = pneg %p73
      %p80 = scmp.eq.s32.totalorder %s22, 1
      %p81 = por %p79, %p80
      %p82 = scmp.ne.s32.totalorder %s74, %s77
      %p83 = scmp.eq.s32.totalorder %s22, 0
      %p84 = por %p82, %p83
      %p85 = scmp.ne.s32.totalorder %s74, %s77
      %p86 = scmp.eq.s32.totalorder %s27, 1
      %p87 = por %p85, %p86
      %p88 = scmp.ne.s32.totalorder %s77, %s78
      %p89 = scmp.eq.s32.totalorder %s27, 0
      %p90 = por %p88, %p89
      %p91 = scmp.ne.s32.totalorder %s77, %s78
      %p92 = scmp.eq.s32.totalorder %s28, 1
      %p93 = por %p91, %p92
      %p95 = scmp.ne.s32.totalorder %s78, %s94
      %p96 = scmp.eq.s32.totalorder %s28, 0
      %p97 = por %p95, %p96
      %p98 = scmp.le.s32.totalorder 1, %s22
      %p99 = scmp.lt.s32.totalorder %s22, 3
      %p100 = pnand %p98, %p99
      %p101 = pneg %p100
      // Predicated region
      $region9: #{tpu_custom_call.1} parent=5 // pred_check
        _
      $region10: #{tpu_custom_call.1} parent=5 // pred_check_branch
        %103 = sbr.rel (%p100) target = $region12
      $region11: #{tpu_custom_call.1} parent=5 // pred_region
        %s104 = ssub.s32 %s22, 1
      $region12: #{tpu_custom_call.1} parent=5 // pred_fallthru
        _
      %p105 = scmp.lt.s32.totalorder %s22, 2
      // Predicated region
      $region13: #{tpu_custom_call.1} parent=5 // pred_check
        %p106 = pneg %p105
      $region14: #{tpu_custom_call.1} parent=5 // pred_check_branch
        %108 = sbr.rel (%p106) target = $region16
      $region15: #{tpu_custom_call.1} parent=5 // pred_region
        // Predicated region
        $region17: #{tpu_custom_call.1} parent=15 // pred_check
          %p109 = pneg %p56
        $region18: #{tpu_custom_call.1} parent=15 // pred_check_branch
          %111 = sbr.rel (%p109) target = $region20
        $region19: #{tpu_custom_call.1} parent=15 // pred_region
          %s112 = sand.u32 %s46, 1
          %s113 = scalar_lea.sflag [#allocation5], %s112
          %s114 = sand.u32 %s46, 1
          %s115 = smul.addr %s114, 16
          %s116 = scalar_lea.vmem [#allocation4], %s115
          %s117 = smul.u32 4, %s30
          %119 = vsyncadd %s113, 0
          %s120 = smul.addr %s29, 4
          %s121 = sadd.s32 %s117, %s120
          %s122 = smul.addr %s121, 4
          %s123 = scalar_lea.hbm %s1, %s122
          %s125 = sshll.u32 %s123, 4
          %s126 = int_to_ptr.hbm [resolvable:$true] %s125
          %s127 = sshll.u32 %s116, 4
          %s128 = int_to_ptr.vmem [resolvable:$true] %s127
          %130 = dma.hbm_to_vmem [thread:$0]  %s126, 256, %s128, %s113
        $region20: #{tpu_custom_call.1} parent=15 // pred_fallthru
          _
      $region16: #{tpu_custom_call.1} parent=5 // pred_fallthru
        _
      %p131 = scmp.le.s32.totalorder 1, %s22
      %p132 = scmp.lt.s32.totalorder %s22, 3
      %p133 = pnand %p131, %p132
      %p134 = pneg %p133
      // Predicated region
      $region21: #{tpu_custom_call.1} parent=5 // pred_check
        _
      $region22: #{tpu_custom_call.1} parent=5 // pred_check_branch
        %136 = sbr.rel (%p133) target = $region24
      $region23: #{tpu_custom_call.1} parent=5 // pred_region
        %s137 = ssub.s32 %s22, 1
        %s138 = sand.u32 %s49, 1
        %s139 = scalar_lea.sflag [#allocation5], %s138
        %s140 = sand.u32 %s49, 1
        %s141 = smul.addr %s140, 16
        %s142 = scalar_lea.vmem [#allocation4], %s141
        // Predicated region
        $region25: #{tpu_custom_call.1} parent=23 // pred_check
          %p143 = pneg %p62
        $region26: #{tpu_custom_call.1} parent=23 // pred_check_branch
          %145 = sbr.rel (%p143) target = $region28
        $region27: #{tpu_custom_call.1} parent=23 // pred_region
          %147 = dma.done %s139, 256
        $region28: #{tpu_custom_call.1} parent=23 // pred_fallthru
          _
        %s148 = sand.u32 %s49, 1
        %s149 = scalar_lea.sflag [#allocation5], %s148
        %s150 = sand.u32 %s49, 1
        %s151 = smul.addr %s150, 16
        %s152 = scalar_lea.vmem [#allocation4], %s151
        %p153 = pneg %p62
        %p154 = pneg %p59
        %p155 = pneg %p90
        %p156 = pneg %p87
        %s157 = sand.u32 %s77, 1
        %s158 = scalar_lea.sflag [#allocation6], %s157
        %s159 = sand.u32 %s77, 1
        %s160 = smul.addr %s159, 4
        %s161 = scalar_lea.vmem [#allocation7], %s160
        %s162 = smul.u32 4, %s32
        %s163 = smul.u32 4, %s32
        %v164 = vld [vmem:[%s142] ss:$4 sm:$0xf]
        %s165 = sld [smem:[#allocation3]]
        %v166 = vstv %s165
        %v167 = vmul.f32 %v164, %v166
        %s168 = scalar_lea.vmem %s142, 1 [#allocation4]
        %v169 = vld [vmem:[%s168] ss:$4 sm:$0xf]
        %s170 = sld [smem:[#allocation3 + $0x1]]
        %v171 = vstv %s170
        %v172 = vmul.f32 %v169, %v171
        %s173 = scalar_lea.vmem %s142, 2 [#allocation4]
        %v174 = vld [vmem:[%s173] ss:$4 sm:$0xf]
        %s175 = sld [smem:[#allocation3 + $0x2]]
        %v176 = vstv %s175
        %v177 = vmul.f32 %v174, %v176
        %s178 = scalar_lea.vmem %s142, 3 [#allocation4]
        %v179 = vld [vmem:[%s178] ss:$4 sm:$0xf]
        %s180 = sld [smem:[#allocation3 + $0x3]]
        %v181 = vstv %s180
        %v182 = vmul.f32 %v179, %v181
        %v183 = vadd.f32 %v167, %v172
        %v184 = vadd.f32 %v177, %v182
        %v185 = vadd.f32 %v183, %v184
        %v186 = vlaneseq
        %vm187 = vcmp.ge.s32.totalorder %v186, 0
        %vm188 = vcmp.lt.s32.totalorder %v186, 512
        %vm189 = vmand %vm187, %vm188
        %190 = vst.msk [vmem:[%s161] sm:$0xf] %vm189, %v185
        %s191 = sand.u32 %s77, 1
        %s192 = scalar_lea.sflag [#allocation6], %s191
        %s193 = sand.u32 %s77, 1
        %s194 = smul.addr %s193, 4
        %s195 = scalar_lea.vmem [#allocation7], %s194
        // Predicated region
        $region29: #{tpu_custom_call.1} parent=23 // pred_check
          %p196 = pneg %p87
        $region30: #{tpu_custom_call.1} parent=23 // pred_check_branch
          %198 = sbr.rel (%p196) target = $region32
        $region31: #{tpu_custom_call.1} parent=23 // pred_region
          %s199 = smul.u32 4, %s32
          %201 = vsyncadd %s192, 0
          %s202 = smul.addr %s31, 4
          %s203 = sadd.s32 %s199, %s202
          %s204 = scalar_lea.hbm %s2, %s203
          %s206 = sshll.u32 %s195, 4
          %s207 = int_to_ptr.vmem [resolvable:$true] %s206
          %s208 = sshll.u32 %s204, 4
          %s209 = int_to_ptr.hbm [resolvable:$true] %s208
          %211 = dma.vmem_to_hbm [thread:$0]  %s207, 64, %s209, %s192
        $region32: #{tpu_custom_call.1} parent=23 // pred_fallthru
          _
      $region24: #{tpu_custom_call.1} parent=5 // pred_fallthru
        _
      %p212 = scmp.le.s32.totalorder 2, %s22
      // Predicated region
      $region33: #{tpu_custom_call.1} parent=5 // pred_check
        %p213 = pneg %p212
      $region34: #{tpu_custom_call.1} parent=5 // pred_check_branch
        %215 = sbr.rel (%p213) target = $region36
      $region35: #{tpu_custom_call.1} parent=5 // pred_region
        %s216 = ssub.s32 %s22, 2
        // Predicated region
        $region37: #{tpu_custom_call.1} parent=35 // pred_check
          %p217 = pneg %p93
        $region38: #{tpu_custom_call.1} parent=35 // pred_check_branch
          %219 = sbr.rel (%p217) target = $region40
        $region39: #{tpu_custom_call.1} parent=35 // pred_region
          %s220 = sand.u32 %s78, 1
          %s221 = scalar_lea.sflag [#allocation6], %s220
          %s222 = sand.u32 %s78, 1
          %s223 = smul.addr %s222, 4
          %s224 = scalar_lea.vmem [#allocation7], %s223
          %226 = dma.done %s221, 64
        $region40: #{tpu_custom_call.1} parent=35 // pred_fallthru
          _
      $region36: #{tpu_custom_call.1} parent=5 // pred_fallthru
        _
    $region6: #{tpu_custom_call.1} parent=1 // loop_footer
      %s26 = sadd.s32 1, %s22
    $region7: #{tpu_custom_call.1} parent=1 // loop_footer_branch
      %21 = sbr.rel target = $region3
    $region8: #{tpu_custom_call.1} parent=1 // loop_exit
      _
    %227 = vsyncpa [#allocation5], 1
    %s228 = scalar_lea.sflag [#allocation5], 1
    %229 = vsyncpa %s228, 1
    %230 = vsyncpa [#allocation6], 1
    %s231 = scalar_lea.sflag [#allocation6], 1
    %232 = vsyncpa %s231, 1

</llo_original>
